<compile_context>
chip_gen: v7x
topology: tpu7x:2x2x1
jax: 0.10.0
libtpu: 0.0.40
codegen_flags: <defaults>
</compile_context>

<pallas_src>
import jax
import jax.numpy as jnp
from jax import lax
from jax.experimental import pallas as pl
from jax.experimental.pallas import tpu as pltpu


def baseline_kernel(x_ref, conv_ref, bn_ref, o_ref):
    # x_ref:    (N*Cin, HW)   raw images, HW (multiple of 128) on the lane axis
    # conv_ref: (Cout, Cin+1) [:, :Cin] folded 1x1-conv weight, [:, Cin] folded bias
    # bn_ref:   (2, Cout)     row 0 = gamma / HW (mean-pool scale folded), row 1 = beta
    # o_ref:    (N, Cout)     per-image embeddings (final layout, no XLA transpose)
    n_imgs = o_ref.shape[0]
    cout = o_ref.shape[1]
    hw = x_ref.shape[1]
    cin = x_ref.shape[0] // n_imgs

    wt = conv_ref[:, :cin]                                            # (Cout, Cin)
    bias_full = jnp.broadcast_to(conv_ref[:, cin:cin + 1], (cout, hw))  # hoisted broadcast
    scale_row = bn_ref[0:1, :]                                        # (1, Cout)
    beta_row = bn_ref[1:2, :]                                         # (1, Cout)
    ones_hw = jnp.ones((1, hw), jnp.float32)                          # pooling vector

    for i in range(n_imgs):  # small static batch -> fully unrolled
        xi = x_ref[i * cin:(i + 1) * cin, :]                          # (Cin, HW)
        y = jnp.dot(wt, xi, preferred_element_type=jnp.float32)       # (Cout, HW) MXU
        z = jnp.maximum(y + bias_full, 0.0)                           # bias + ReLU (VPU)
        # Spatial sum as trans-RHS matmul: (1, HW) x (Cout, HW)^T -> (1, Cout) row.
        pooled = lax.dot_general(ones_hw, z, (((1,), (1,)), ((), ())),
                                 preferred_element_type=jnp.float32)
        o_ref[i:i + 1, :] = pooled * scale_row + beta_row             # BN-neck affine, row store


def baseline_forward(images_nchw, pixel_mean, pixel_std, w, b, gamma, beta):
    """images_nchw: (N, C, H, W) float32 -> embeddings (N, feat_dim) float32."""
    n, c, h, w_ = images_nchw.shape
    feat_dim = w.shape[1]
    hw = h * w_

    # Pure reshape (no HBM transpose pass): NCHW viewed as a sublane-dense (N*C, HW) slab.
    x = images_nchw.reshape(n * c, hw)

    # Fold preprocess (x - mean) / std into the 1x1-conv weights and bias:
    #   ((x - m)/s) @ W + b  ==  x @ (W / s[:,None]) + (b - (m/s) @ W)
    inv_std = 1.0 / pixel_std.astype(jnp.float32)
    w_fold = w * inv_std[:, None]                                     # (C, F)
    b_fold = b - (pixel_mean.astype(jnp.float32) * inv_std) @ w       # (F,)

    # Packed parameter arrays (2 inputs instead of 5).
    conv_params = jnp.concatenate(
        [jnp.transpose(w_fold), b_fold.reshape(feat_dim, 1)], axis=1)  # (F, C+1)
    bn_params = jnp.stack([gamma / float(hw), beta], axis=0)           # (2, F)

    cost = pl.CostEstimate(
        flops=2 * n * hw * c * feat_dim + 2 * n * hw * feat_dim,
        transcendentals=0,
        bytes_accessed=4 * (n * c * hw + feat_dim * (c + 1) + 2 * feat_dim + n * feat_dim),
    )

    # Gridless call: whole problem is one VMEM block; no pipeline machinery.
    return pl.pallas_call(
        baseline_kernel,
        out_shape=jax.ShapeDtypeStruct((n, feat_dim), jnp.float32),
        in_specs=[
            pl.BlockSpec(memory_space=pltpu.MemorySpace.VMEM),   # images (N*Cin, HW)
            pl.BlockSpec(memory_space=pltpu.MemorySpace.VMEM),   # packed conv params
            pl.BlockSpec(memory_space=pltpu.MemorySpace.VMEM),   # packed BN-neck params
        ],
        out_specs=pl.BlockSpec(memory_space=pltpu.MemorySpace.VMEM),
        cost_estimate=cost,
    )(x, conv_params, bn_params)


def reference_forward(images_nchw, pixel_mean, pixel_std, w, b, gamma, beta):
    n, c, h, w_ = images_nchw.shape
    x = (images_nchw - pixel_mean.reshape(1, c, 1, 1)) / pixel_std.reshape(1, c, 1, 1)
    x = jnp.transpose(x, (0, 2, 3, 1)).reshape(n, h * w_, c)
    y = jnp.maximum(jnp.einsum('nsc,cd->nsd', x, w) + b.reshape(1, 1, -1), 0.0)
    pooled = jnp.mean(y, axis=1)
    return pooled * gamma.reshape(1, -1) + beta.reshape(1, -1)


if __name__ == "__main__":
    key = jax.random.PRNGKey(0)
    k_img, k_w, k_b, k_g, k_be = jax.random.split(key, 5)

    N, C, H, W = 2, 4, 16, 16   # small synthetic shapes (NCHW like PyTorch)
    FEAT_DIM = 32

    images = jax.random.normal(k_img, (N, C, H, W), dtype=jnp.float32)
    pixel_mean = jnp.array([0.485, 0.456, 0.406, 0.5], dtype=jnp.float32)
    pixel_std = jnp.array([0.229, 0.224, 0.225, 0.25], dtype=jnp.float32)

    # Deterministic synthetic params (backbone 1x1 conv + BN-neck affine).
    w = jax.random.normal(k_w, (C, FEAT_DIM), dtype=jnp.float32) * 0.1
    b = jax.random.normal(k_b, (FEAT_DIM,), dtype=jnp.float32) * 0.01
    gamma = 1.0 + 0.05 * jax.random.normal(k_g, (FEAT_DIM,), dtype=jnp.float32)
    beta = 0.01 * jax.random.normal(k_be, (FEAT_DIM,), dtype=jnp.float32)

    # TODO(synk): training branch (multi-head losses, person-crop branch images_p,
    # layout/p_mask bookkeeping, counting_member_total) has no single-kernel
    # equivalent; only the eval path (heads_g embedding) is implemented here.

    out = baseline_forward(images, pixel_mean, pixel_std, w, b, gamma, beta)
    out = jax.block_until_ready(out)

    ref = reference_forward(images, pixel_mean, pixel_std, w, b, gamma, beta)
    assert out.shape == (N, FEAT_DIM)
    assert jnp.allclose(out, ref, atol=1e-4, rtol=1e-4)
    print("KERNEL_OK")
</pallas_src>

<mosaic_0001>
module attributes {stable_mosaic.version = 11 : i64} {
  func.func @baseline_kernel(%arg0: memref<8x256xf32, #tpu.memory_space<vmem>>, %arg1: memref<32x5xf32, #tpu.memory_space<vmem>>, %arg2: memref<2x32xf32, #tpu.memory_space<vmem>>, %arg3: memref<2x32xf32, #tpu.memory_space<vmem>>) attributes {dimension_semantics = [], scalar_prefetch = 0 : i64, scratch_operands = 0 : i64, tpu.core_type = #tpu.core_type<tc>} {
    %c0 = arith.constant 0 : index
    %c0_0 = arith.constant 0 : index
    %0 = vector.load %arg1[%c0, %c0_0] : memref<32x5xf32, #tpu.memory_space<vmem>>, vector<32x4xf32>
    %c0_1 = arith.constant 0 : index
    %c4 = arith.constant 4 : index
    %1 = vector.load %arg1[%c0_1, %c4] : memref<32x5xf32, #tpu.memory_space<vmem>>, vector<32x1xf32>
    %2 = vector.shape_cast %1 : vector<32x1xf32> to vector<32x1xf32>
    %3 = vector.broadcast %2 : vector<32x1xf32> to vector<32x256xf32>
    %c0_2 = arith.constant 0 : index
    %c0_3 = arith.constant 0 : index
    %4 = vector.load %arg2[%c0_2, %c0_3] : memref<2x32xf32, #tpu.memory_space<vmem>>, vector<1x32xf32>
    %c1 = arith.constant 1 : index
    %c0_4 = arith.constant 0 : index
    %5 = vector.load %arg2[%c1, %c0_4] : memref<2x32xf32, #tpu.memory_space<vmem>>, vector<1x32xf32>
    %cst = arith.constant 1.000000e+00 : f32
    %6 = vector.broadcast %cst : f32 to vector<1x256xf32>
    %c0_5 = arith.constant 0 : index
    %c0_6 = arith.constant 0 : index
    %7 = vector.load %arg0[%c0_5, %c0_6] : memref<8x256xf32, #tpu.memory_space<vmem>>, vector<4x256xf32>
    %cst_7 = arith.constant dense<0.000000e+00> : vector<32x256xf32>
    %8 = tpu.matmul %0, %7, %cst_7 {dimension_numbers = #tpu.dot_dimension_numbers<[1], [0], [0], [1], [0, 0, 1, 1], [], []>} : vector<32x4xf32>, vector<4x256xf32>, vector<32x256xf32> -> vector<32x256xf32>
    %9 = arith.addf %8, %3 : vector<32x256xf32>
    %cst_8 = arith.constant 0.000000e+00 : f32
    %10 = vector.broadcast %cst_8 : f32 to vector<32x256xf32>
    %11 = arith.maximumf %9, %10 : vector<32x256xf32>
    %cst_9 = arith.constant dense<0.000000e+00> : vector<1x32xf32>
    %12 = tpu.matmul %6, %11, %cst_9 {dimension_numbers = #tpu.dot_dimension_numbers<[1], [1], [0], [0], [0, 0, 1, 0], [], []>} : vector<1x256xf32>, vector<32x256xf32>, vector<1x32xf32> -> vector<1x32xf32>
    %13 = arith.mulf %12, %4 : vector<1x32xf32>
    %14 = arith.addf %13, %5 : vector<1x32xf32>
    %c0_10 = arith.constant 0 : index
    %c0_11 = arith.constant 0 : index
    %15 = vector.load %arg3[%c0_10, %c0_11] : memref<2x32xf32, #tpu.memory_space<vmem>>, vector<1x32xf32>
    tpu.vector_store %arg3[%c0_10, %c0_11], %14 {strides = array<i32>} : memref<2x32xf32, #tpu.memory_space<vmem>>, vector<1x32xf32>,
    %c4_12 = arith.constant 4 : index
    %c0_13 = arith.constant 0 : index
    %16 = vector.load %arg0[%c4_12, %c0_13] : memref<8x256xf32, #tpu.memory_space<vmem>>, vector<4x256xf32>
    %cst_14 = arith.constant dense<0.000000e+00> : vector<32x256xf32>
    %17 = tpu.matmul %0, %16, %cst_14 {dimension_numbers = #tpu.dot_dimension_numbers<[1], [0], [0], [1], [0, 0, 1, 1], [], []>} : vector<32x4xf32>, vector<4x256xf32>, vector<32x256xf32> -> vector<32x256xf32>
    %18 = arith.addf %17, %3 : vector<32x256xf32>
    %cst_15 = arith.constant 0.000000e+00 : f32
    %19 = vector.broadcast %cst_15 : f32 to vector<32x256xf32>
    %20 = arith.maximumf %18, %19 : vector<32x256xf32>
    %cst_16 = arith.constant dense<0.000000e+00> : vector<1x32xf32>
    %21 = tpu.matmul %6, %20, %cst_16 {dimension_numbers = #tpu.dot_dimension_numbers<[1], [1], [0], [0], [0, 0, 1, 0], [], []>} : vector<1x256xf32>, vector<32x256xf32>, vector<1x32xf32> -> vector<1x32xf32>
    %22 = arith.mulf %21, %4 : vector<1x32xf32>
    %23 = arith.addf %22, %5 : vector<1x32xf32>
    %c1_17 = arith.constant 1 : index
    %c0_18 = arith.constant 0 : index
    %24 = vector.load %arg3[%c1_17, %c0_18] : memref<2x32xf32, #tpu.memory_space<vmem>>, vector<1x32xf32>
    tpu.vector_store %arg3[%c1_17, %c0_18], %23 {strides = array<i32>} : memref<2x32xf32, #tpu.memory_space<vmem>>, vector<1x32xf32>,
    return
  }
}

</mosaic_0001>

<llo_original>
// kernel: tpu_custom_call.1
$region0: #{tpu_custom_call.1}
  #allocation0 [shape = 'u32[]', space=smem, size = 0x4, offset = 0x4, fixed_abs, tag = 'smem constant byte address 0x4 - core index']
  #allocation1 [shape = 'u32[144,128]{1,0:T(1,128)}', space=vmem, size = 0x12000, scoped, tag = 'internal scratch']
  %s0 = inlined_call_operand.vmem [shape: f32[8,256], index: 0, kind: input, shape index: {}]
  %s1 = inlined_call_operand.vmem [shape: f32[32,5], index: 1, kind: input, shape index: {}]
  %s2 = inlined_call_operand.vmem [shape: f32[2,32], index: 2, kind: input, shape index: {}]
  %s3 = inlined_call_operand.hbm [shape: f32[2,32], index: 3, kind: output, shape index: {}]
  %s4 = sld [smem:[#allocation0]]
  $region22: #{tpu_custom_call.1} parent=0
    _
  %s6 = ssub.s32 1, %s4
  %s7 = scalar_select 0, %s6, %s4
  $region1: #{tpu_custom_call.1} parent=0
    #allocation2 [shape = 'u8[1024]{0}', space=vmem, size = 0x400, scoped, tag = 'output window, operand 0, single buffered']
    #allocation3 [shape = 's32[1]{0}', space=sflag, size = 0x4, scoped, tag = 'scoped memory for tpu_custom_call.1']
    %8 = vsyncpa [#allocation3], 0
    // Predicated region
    $region2: #{tpu_custom_call.1} parent=1 // pred_check
      _
    $region3: #{tpu_custom_call.1} parent=1 // pred_check_branch
      %10 = sbr.rel (0) target = $region5
    $region4: #{tpu_custom_call.1} parent=1 // pred_region
      _
    $region5: #{tpu_custom_call.1} parent=1 // pred_fallthru
      _
    // Predicated region
    $region6: #{tpu_custom_call.1} parent=1 // pred_check
      _
    $region7: #{tpu_custom_call.1} parent=1 // pred_check_branch
      %12 = sbr.rel (0) target = $region9
    $region8: #{tpu_custom_call.1} parent=1 // pred_region
      _
    $region9: #{tpu_custom_call.1} parent=1 // pred_fallthru
      _
    // Predicated region
    $region10: #{tpu_custom_call.1} parent=1 // pred_check
      _
    $region11: #{tpu_custom_call.1} parent=1 // pred_check_branch
      %14 = sbr.rel (0) target = $region13
    $region12: #{tpu_custom_call.1} parent=1 // pred_region
      _
    $region13: #{tpu_custom_call.1} parent=1 // pred_fallthru
      _
    %v15 = vld [vmem:[%s1] sm:$0xff]
    %v16 = vld [vmem:[%s1 + $0x8] sm:$0xff]
    %v17 = vld [vmem:[%s1 + $0x10] sm:$0xff]
    %v18 = vld [vmem:[%s1 + $0x18] sm:$0xff]
    %20 = vset.pattern.permute.xlu0 4
    %21 = vperm.xlu0 %20, %v15
    %v22 = vpop.permute.xlu0 %21
    %25 = vset.pattern.permute.xlu0 4
    %26 = vperm.xlu0 %25, %v16
    %v27 = vpop.permute.xlu0 %26
    %30 = vset.pattern.permute.xlu0 4
    %31 = vperm.xlu0 %30, %v17
    %v32 = vpop.permute.xlu0 %31
    %35 = vset.pattern.permute.xlu0 4
    %36 = vperm.xlu0 %35, %v18
    %v37 = vpop.permute.xlu0 %36
    %v39 = vld [vmem:[%s2] sm:$0x1]
    %v40 = vld [vmem:[%s2 + $0x1] sm:$0x1]
    %v41 = vld [vmem:[%s0] sm:$0xf]
    %v42 = vld [vmem:[%s0 + $0x8] sm:$0xf]
    %vm43 = vcmask 31744
    %v44 = vsel %vm43, %v15, 0
    %v46 = vsel %vm43, %v16, 0
    %v48 = vsel %vm43, %v17, 0
    %v50 = vsel %vm43, %v18, 0
    %vm52 = vcmask 1043456
    %v54 = vsel %vm52, %v41, 0
    %v57 = vsel %vm52, %v42, 0
    %59 = vmatprep.subr.mxu0 %v57
    %60 = vmatpush1.msra.mxu0 %v54
    %61 = vmatprep.subr.mxu0 0.0
    %62 = vmatpush1.msra.mxu0 0.0
    %63 = vmatprep.subr.mxu0 0.0
    %64 = vmatpush1.msra.mxu0 0.0
    %65 = vmatprep.subr.mxu0 0.0
    %66 = vmatpush1.msra.mxu0 0.0
    %67 = vmatprep.subr.mxu0 0.0
    %68 = vmatpush1.msra.mxu0 0.0
    %69 = vmatprep.subr.mxu0 0.0
    %70 = vmatpush1.msra.mxu0 0.0
    %71 = vmatprep.subr.mxu0 0.0
    %72 = vmatpush1.msra.mxu0 0.0
    %73 = vmatprep.subr.mxu0 0.0
    %74 = vmatpush1.msra.mxu0 0.0
    %75 = vmatprep.subr.mxu0 0.0
    %76 = vmatpush1.msra.mxu0 0.0
    %77 = vmatprep.subr.mxu0 0.0
    %78 = vmatpush1.msra.mxu0 0.0
    %79 = vmatprep.subr.mxu0 0.0
    %80 = vmatpush1.msra.mxu0 0.0
    %81 = vmatprep.subr.mxu0 0.0
    %82 = vmatpush1.msra.mxu0 0.0
    %83 = vmatprep.subr.mxu0 0.0
    %84 = vmatpush1.msra.mxu0 0.0
    %85 = vmatprep.subr.mxu0 0.0
    %86 = vmatpush1.msra.mxu0 0.0
    %87 = vmatprep.subr.mxu0 0.0
    %88 = vmatpush1.msra.mxu0 0.0
    %89 = vmatprep.subr.mxu0 0.0
    %90 = vmatpush1.msra.mxu0 0.0
    %91 = vmatprep.subr.mxu0 0.0
    %92 = vmatpush1.msra.mxu0 0.0
    %93 = vmatprep.subr.mxu0 0.0
    %94 = vmatpush1.msra.mxu0 0.0
    %95 = vmatprep.subr.mxu0 0.0
    %96 = vmatpush1.msra.mxu0 0.0
    %97 = vmatprep.subr.mxu0 0.0
    %98 = vmatpush1.msra.mxu0 0.0
    %99 = vmatprep.subr.mxu0 0.0
    %100 = vmatpush1.msra.mxu0 0.0
    %101 = vmatprep.subr.mxu0 0.0
    %102 = vmatpush1.msra.mxu0 0.0
    %103 = vmatprep.subr.mxu0 0.0
    %104 = vmatpush1.msra.mxu0 0.0
    %105 = vmatprep.subr.mxu0 0.0
    %106 = vmatpush1.msra.mxu0 0.0
    %107 = vmatprep.subr.mxu0 0.0
    %108 = vmatpush1.msra.mxu0 0.0
    %109 = vmatprep.subr.mxu0 0.0
    %110 = vmatpush1.msra.mxu0 0.0
    %111 = vmatprep.subr.mxu0 0.0
    %112 = vmatpush1.msra.mxu0 0.0
    %113 = vmatprep.subr.mxu0 0.0
    %114 = vmatpush1.msra.mxu0 0.0
    %115 = vmatprep.subr.mxu0 0.0
    %116 = vmatpush1.msra.mxu0 0.0
    %117 = vmatprep.subr.mxu0 0.0
    %118 = vmatpush1.msra.mxu0 0.0
    %119 = vmatprep.subr.mxu0 0.0
    %120 = vmatpush1.msra.mxu0 0.0
    %121 = vmatprep.subr.mxu0 0.0
    %122 = vmatpush1.msra.mxu0 0.0
    %123 = vmatprep.mubr.f32.mxu0 0.0
    %124 = vmatmul.mubr.f32.gmra.mrb[0].mxu0 %v44
    %v125 = vpop.f32.mrb[0].mxu0
    %v126 = vadd.f32 %v22, %v125
    %v127 = vpop.f32.mrb[0].mxu0
    %v128 = vadd.f32 %v22, %v127
    %129 = vmatprep.mubr.f32.mxu0 0.0
    %130 = vmatmul.mubr.f32.gmra.mrb[0].mxu0 %v46
    %v131 = vpop.f32.mrb[0].mxu0
    %v132 = vadd.f32 %v27, %v131
    %v133 = vpop.f32.mrb[0].mxu0
    %v134 = vadd.f32 %v27, %v133
    %135 = vmatprep.mubr.f32.mxu0 0.0
    %136 = vmatmul.mubr.f32.gmra.mrb[0].mxu0 %v48
    %v137 = vpop.f32.mrb[0].mxu0
    %v138 = vadd.f32 %v32, %v137
    %v139 = vpop.f32.mrb[0].mxu0
    %v140 = vadd.f32 %v32, %v139
    %141 = vmatprep.mubr.f32.mxu0 0.0
    %142 = vmatmul.mubr.f32.gmra.mrb[0].mxu0 %v50
    %v143 = vpop.f32.mrb[0].mxu0
    %v144 = vadd.f32 %v37, %v143
    %v145 = vpop.f32.mrb[0].mxu0
    %v146 = vadd.f32 %v37, %v145
    %147 = vdwg.mxu0
    %v148 = vmax.f32 %v126, 0.0
    %v149 = vmax.f32 %v128, 0.0
    %v150 = vmax.f32 %v132, 0.0
    %v151 = vmax.f32 %v134, 0.0
    %v152 = vmax.f32 %v138, 0.0
    %v153 = vmax.f32 %v140, 0.0
    %v154 = vmax.f32 %v144, 0.0
    %v155 = vmax.f32 %v146, 0.0
    %156 = vmatprep.subr.mxu0 %v149
    %157 = vmatpush1.xpose.msra.mxu0 %v148
    %158 = vmatprep.subr.mxu0 %v151
    %159 = vmatpush1.xpose.msra.mxu0 %v150
    %160 = vmatprep.subr.mxu0 %v153
    %161 = vmatpush1.xpose.msra.mxu0 %v152
    %162 = vmatprep.subr.mxu0 %v155
    %163 = vmatpush1.xpose.msra.mxu0 %v154
    %164 = vmatprep.subr.mxu0 0.0
    %165 = vmatpush1.xpose.msra.mxu0 0.0
    %166 = vmatprep.subr.mxu0 0.0
    %167 = vmatpush1.xpose.msra.mxu0 0.0
    %168 = vmatprep.subr.mxu0 0.0
    %169 = vmatpush1.xpose.msra.mxu0 0.0
    %170 = vmatprep.subr.mxu0 0.0
    %171 = vmatpush1.xpose.msra.mxu0 0.0
    %172 = vmatprep.subr.mxu0 0.0
    %173 = vmatpush1.xpose.msra.mxu0 0.0
    %174 = vmatprep.subr.mxu0 0.0
    %175 = vmatpush1.xpose.msra.mxu0 0.0
    %176 = vmatprep.subr.mxu0 0.0
    %177 = vmatpush1.xpose.msra.mxu0 0.0
    %178 = vmatprep.subr.mxu0 0.0
    %179 = vmatpush1.xpose.msra.mxu0 0.0
    %180 = vmatprep.subr.mxu0 0.0
    %181 = vmatpush1.xpose.msra.mxu0 0.0
    %182 = vmatprep.subr.mxu0 0.0
    %183 = vmatpush1.xpose.msra.mxu0 0.0
    %184 = vmatprep.subr.mxu0 0.0
    %185 = vmatpush1.xpose.msra.mxu0 0.0
    %186 = vmatprep.subr.mxu0 0.0
    %187 = vmatpush1.xpose.msra.mxu0 0.0
    %188 = vmatprep.subr.mxu0 0.0
    %189 = vmatpush1.xpose.msra.mxu0 0.0
    %190 = vmatprep.subr.mxu0 0.0
    %191 = vmatpush1.xpose.msra.mxu0 0.0
    %192 = vmatprep.subr.mxu0 0.0
    %193 = vmatpush1.xpose.msra.mxu0 0.0
    %194 = vmatprep.subr.mxu0 0.0
    %195 = vmatpush1.xpose.msra.mxu0 0.0
    %196 = vmatprep.subr.mxu0 0.0
    %197 = vmatpush1.xpose.msra.mxu0 0.0
    %198 = vmatprep.subr.mxu0 0.0
    %199 = vmatpush1.xpose.msra.mxu0 0.0
    %200 = vmatprep.subr.mxu0 0.0
    %201 = vmatpush1.xpose.msra.mxu0 0.0
    %202 = vmatprep.subr.mxu0 0.0
    %203 = vmatpush1.xpose.msra.mxu0 0.0
    %204 = vmatprep.subr.mxu0 0.0
    %205 = vmatpush1.xpose.msra.mxu0 0.0
    %206 = vmatprep.subr.mxu0 0.0
    %207 = vmatpush1.xpose.msra.mxu0 0.0
    %208 = vmatprep.subr.mxu0 0.0
    %209 = vmatpush1.xpose.msra.mxu0 0.0
    %210 = vmatprep.subr.mxu0 0.0
    %211 = vmatpush1.xpose.msra.mxu0 0.0
    %212 = vmatprep.subr.mxu0 0.0
    %213 = vmatpush1.xpose.msra.mxu0 0.0
    %214 = vmatprep.subr.mxu0 0.0
    %215 = vmatpush1.xpose.msra.mxu0 0.0
    %216 = vmatprep.subr.mxu0 0.0
    %217 = vmatpush1.xpose.msra.mxu0 0.0
    %218 = vmatprep.subr.mxu0 0.0
    %219 = vmatpush1.xpose.msra.mxu0 0.0
    %220 = vmatprep.mubr.f32.mxu0 1.0
    %221 = vmatmul.mubr.f32.gmra.mrb[0].mxu0 1.0
    %v222 = vpop.f32.mrb[0].mxu0
    %v223 = vadd.f32 0.0, %v222
    %v224 = vpop.f32.mrb[0].mxu0
    %225 = vdwg.mxu0
    %v226 = vmul.f32 %v223, %v39
    %v227 = vadd.f32 %v226, %v40
    %vm228 = vcmask 253952
    %229 = vst.msk [vmem:[#allocation2] sm:$0x1] %vm228, %v227
    %v230 = vld [vmem:[%s0] sm:$0xf0]
    %v231 = vld [vmem:[%s0 + $0x8] sm:$0xf0]
    %v234 = vrot.slane %v230, 4
    %v235 = vrot.slane %v231, 4
    %v236 = vsel %vm52, %v234, 0
    %v238 = vsel %vm52, %v235, 0
    %240 = vmatprep.subr.mxu0 %v238
    %241 = vmatpush1.msra.mxu0 %v236
    %242 = vmatprep.subr.mxu0 0.0
    %243 = vmatpush1.msra.mxu0 0.0
    %244 = vmatprep.subr.mxu0 0.0
    %245 = vmatpush1.msra.mxu0 0.0
    %246 = vmatprep.subr.mxu0 0.0
    %247 = vmatpush1.msra.mxu0 0.0
    %248 = vmatprep.subr.mxu0 0.0
    %249 = vmatpush1.msra.mxu0 0.0
    %250 = vmatprep.subr.mxu0 0.0
    %251 = vmatpush1.msra.mxu0 0.0
    %252 = vmatprep.subr.mxu0 0.0
    %253 = vmatpush1.msra.mxu0 0.0
    %254 = vmatprep.subr.mxu0 0.0
    %255 = vmatpush1.msra.mxu0 0.0
    %256 = vmatprep.subr.mxu0 0.0
    %257 = vmatpush1.msra.mxu0 0.0
    %258 = vmatprep.subr.mxu0 0.0
    %259 = vmatpush1.msra.mxu0 0.0
    %260 = vmatprep.subr.mxu0 0.0
    %261 = vmatpush1.msra.mxu0 0.0
    %262 = vmatprep.subr.mxu0 0.0
    %263 = vmatpush1.msra.mxu0 0.0
    %264 = vmatprep.subr.mxu0 0.0
    %265 = vmatpush1.msra.mxu0 0.0
    %266 = vmatprep.subr.mxu0 0.0
    %267 = vmatpush1.msra.mxu0 0.0
    %268 = vmatprep.subr.mxu0 0.0
    %269 = vmatpush1.msra.mxu0 0.0
    %270 = vmatprep.subr.mxu0 0.0
    %271 = vmatpush1.msra.mxu0 0.0
    %272 = vmatprep.subr.mxu0 0.0
    %273 = vmatpush1.msra.mxu0 0.0
    %274 = vmatprep.subr.mxu0 0.0
    %275 = vmatpush1.msra.mxu0 0.0
    %276 = vmatprep.subr.mxu0 0.0
    %277 = vmatpush1.msra.mxu0 0.0
    %278 = vmatprep.subr.mxu0 0.0
    %279 = vmatpush1.msra.mxu0 0.0
    %280 = vmatprep.subr.mxu0 0.0
    %281 = vmatpush1.msra.mxu0 0.0
    %282 = vmatprep.subr.mxu0 0.0
    %283 = vmatpush1.msra.mxu0 0.0
    %284 = vmatprep.subr.mxu0 0.0
    %285 = vmatpush1.msra.mxu0 0.0
    %286 = vmatprep.subr.mxu0 0.0
    %287 = vmatpush1.msra.mxu0 0.0
    %288 = vmatprep.subr.mxu0 0.0
    %289 = vmatpush1.msra.mxu0 0.0
    %290 = vmatprep.subr.mxu0 0.0
    %291 = vmatpush1.msra.mxu0 0.0
    %292 = vmatprep.subr.mxu0 0.0
    %293 = vmatpush1.msra.mxu0 0.0
    %294 = vmatprep.subr.mxu0 0.0
    %295 = vmatpush1.msra.mxu0 0.0
    %296 = vmatprep.subr.mxu0 0.0
    %297 = vmatpush1.msra.mxu0 0.0
    %298 = vmatprep.subr.mxu0 0.0
    %299 = vmatpush1.msra.mxu0 0.0
    %300 = vmatprep.subr.mxu0 0.0
    %301 = vmatpush1.msra.mxu0 0.0
    %302 = vmatprep.subr.mxu0 0.0
    %303 = vmatpush1.msra.mxu0 0.0
    %304 = vmatprep.mubr.f32.mxu0 0.0
    %305 = vmatmul.mubr.f32.gmra.mrb[0].mxu0 %v44
    %v306 = vpop.f32.mrb[0].mxu0
    %v307 = vadd.f32 %v22, %v306
    %v308 = vpop.f32.mrb[0].mxu0
    %v309 = vadd.f32 %v22, %v308
    %310 = vmatprep.mubr.f32.mxu0 0.0
    %311 = vmatmul.mubr.f32.gmra.mrb[0].mxu0 %v46
    %v312 = vpop.f32.mrb[0].mxu0
    %v313 = vadd.f32 %v27, %v312
    %v314 = vpop.f32.mrb[0].mxu0
    %v315 = vadd.f32 %v27, %v314
    %316 = vmatprep.mubr.f32.mxu0 0.0
    %317 = vmatmul.mubr.f32.gmra.mrb[0].mxu0 %v48
    %v318 = vpop.f32.mrb[0].mxu0
    %v319 = vadd.f32 %v32, %v318
    %v320 = vpop.f32.mrb[0].mxu0
    %v321 = vadd.f32 %v32, %v320
    %322 = vmatprep.mubr.f32.mxu0 0.0
    %323 = vmatmul.mubr.f32.gmra.mrb[0].mxu0 %v50
    %v324 = vpop.f32.mrb[0].mxu0
    %v325 = vadd.f32 %v37, %v324
    %v326 = vpop.f32.mrb[0].mxu0
    %v327 = vadd.f32 %v37, %v326
    %328 = vdwg.mxu0
    %v329 = vmax.f32 %v307, 0.0
    %v330 = vmax.f32 %v309, 0.0
    %v331 = vmax.f32 %v313, 0.0
    %v332 = vmax.f32 %v315, 0.0
    %v333 = vmax.f32 %v319, 0.0
    %v334 = vmax.f32 %v321, 0.0
    %v335 = vmax.f32 %v325, 0.0
    %v336 = vmax.f32 %v327, 0.0
    %337 = vmatprep.subr.mxu0 %v330
    %338 = vmatpush1.xpose.msra.mxu0 %v329
    %339 = vmatprep.subr.mxu0 %v332
    %340 = vmatpush1.xpose.msra.mxu0 %v331
    %341 = vmatprep.subr.mxu0 %v334
    %342 = vmatpush1.xpose.msra.mxu0 %v333
    %343 = vmatprep.subr.mxu0 %v336
    %344 = vmatpush1.xpose.msra.mxu0 %v335
    %345 = vmatprep.subr.mxu0 0.0
    %346 = vmatpush1.xpose.msra.mxu0 0.0
    %347 = vmatprep.subr.mxu0 0.0
    %348 = vmatpush1.xpose.msra.mxu0 0.0
    %349 = vmatprep.subr.mxu0 0.0
    %350 = vmatpush1.xpose.msra.mxu0 0.0
    %351 = vmatprep.subr.mxu0 0.0
    %352 = vmatpush1.xpose.msra.mxu0 0.0
    %353 = vmatprep.subr.mxu0 0.0
    %354 = vmatpush1.xpose.msra.mxu0 0.0
    %355 = vmatprep.subr.mxu0 0.0
    %356 = vmatpush1.xpose.msra.mxu0 0.0
    %357 = vmatprep.subr.mxu0 0.0
    %358 = vmatpush1.xpose.msra.mxu0 0.0
    %359 = vmatprep.subr.mxu0 0.0
    %360 = vmatpush1.xpose.msra.mxu0 0.0
    %361 = vmatprep.subr.mxu0 0.0
    %362 = vmatpush1.xpose.msra.mxu0 0.0
    %363 = vmatprep.subr.mxu0 0.0
    %364 = vmatpush1.xpose.msra.mxu0 0.0
    %365 = vmatprep.subr.mxu0 0.0
    %366 = vmatpush1.xpose.msra.mxu0 0.0
    %367 = vmatprep.subr.mxu0 0.0
    %368 = vmatpush1.xpose.msra.mxu0 0.0
    %369 = vmatprep.subr.mxu0 0.0
    %370 = vmatpush1.xpose.msra.mxu0 0.0
    %371 = vmatprep.subr.mxu0 0.0
    %372 = vmatpush1.xpose.msra.mxu0 0.0
    %373 = vmatprep.subr.mxu0 0.0
    %374 = vmatpush1.xpose.msra.mxu0 0.0
    %375 = vmatprep.subr.mxu0 0.0
    %376 = vmatpush1.xpose.msra.mxu0 0.0
    %377 = vmatprep.subr.mxu0 0.0
    %378 = vmatpush1.xpose.msra.mxu0 0.0
    %379 = vmatprep.subr.mxu0 0.0
    %380 = vmatpush1.xpose.msra.mxu0 0.0
    %381 = vmatprep.subr.mxu0 0.0
    %382 = vmatpush1.xpose.msra.mxu0 0.0
    %383 = vmatprep.subr.mxu0 0.0
    %384 = vmatpush1.xpose.msra.mxu0 0.0
    %385 = vmatprep.subr.mxu0 0.0
    %386 = vmatpush1.xpose.msra.mxu0 0.0
    %387 = vmatprep.subr.mxu0 0.0
    %388 = vmatpush1.xpose.msra.mxu0 0.0
    %389 = vmatprep.subr.mxu0 0.0
    %390 = vmatpush1.xpose.msra.mxu0 0.0
    %391 = vmatprep.subr.mxu0 0.0
    %392 = vmatpush1.xpose.msra.mxu0 0.0
    %393 = vmatprep.subr.mxu0 0.0
    %394 = vmatpush1.xpose.msra.mxu0 0.0
    %395 = vmatprep.subr.mxu0 0.0
    %396 = vmatpush1.xpose.msra.mxu0 0.0
    %397 = vmatprep.subr.mxu0 0.0
    %398 = vmatpush1.xpose.msra.mxu0 0.0
    %399 = vmatprep.subr.mxu0 0.0
    %400 = vmatpush1.xpose.msra.mxu0 0.0
    %401 = vmatprep.mubr.f32.mxu0 1.0
    %402 = vmatmul.mubr.f32.gmra.mrb[0].mxu0 1.0
    %v403 = vpop.f32.mrb[0].mxu0
    %v404 = vadd.f32 0.0, %v403
    %v405 = vpop.f32.mrb[0].mxu0
    %406 = vdwg.mxu0
    %v407 = vmul.f32 %v404, %v39
    %v408 = vadd.f32 %v407, %v40
    %409 = vst.msk [vmem:[#allocation2 + $0x1] sm:$0x1] %vm228, %v408
    // Predicated region
    $region14: #{tpu_custom_call.1} parent=1 // pred_check
      _
    $region15: #{tpu_custom_call.1} parent=1 // pred_check_branch
      %411 = sbr.rel (0) target = $region17
    $region16: #{tpu_custom_call.1} parent=1 // pred_region
      %s413 = ssub.s32 32, 32
      %414 = vsyncadd [#allocation3], %s413
      %s416 = sshll.u32 [#allocation2], 4
      %s417 = int_to_ptr.vmem [resolvable:$true] %s416
      %419 = dma.vmem_to_hbm [thread:$0]  %s417, 32, %s3, [#allocation3]
    $region17: #{tpu_custom_call.1} parent=1 // pred_fallthru
      _
    // Predicated region
    $region18: #{tpu_custom_call.1} parent=1 // pred_check
      _
    $region19: #{tpu_custom_call.1} parent=1 // pred_check_branch
      %421 = sbr.rel (0) target = $region21
    $region20: #{tpu_custom_call.1} parent=1 // pred_region
      %422 = dma.done [#allocation3], 32
    $region21: #{tpu_custom_call.1} parent=1 // pred_fallthru
      _
    %423 = vsyncpa [#allocation3], 1

</llo_original>
